<compile_context>
chip_gen: v7x
topology: tpu7x:2x2x1
jax: 0.10.0
libtpu: 0.0.40
codegen_flags: <defaults>
</compile_context>

<pallas_src>
import math

import jax
import jax.numpy as jnp
import numpy as np
from jax.experimental import pallas as pl
from jax.experimental.pallas import tpu as pltpu


def _round_up(x, m):
    return ((x + m - 1) // m) * m


def _softplus(h):
    # Matches torch.nn.Softplus(beta=1, threshold=20).
    return jnp.where(h > 20.0, h, jnp.log1p(jnp.exp(jnp.minimum(h, 20.0))))


def _elm_kernel(xp_ref, wband_ref, bias_ref, wdiag_ref, o_ref):
    """One row tile: two lane-dense MXU matmuls with a fused softplus.

    xp_ref    : (tm, Np)    circularly padded input rows
    wband_ref : (Np, W*H)   block-banded first-layer weight
    bias_ref  : (1,  W*H)   per-window bias (positional encoding folded in)
    wdiag_ref : (W*H, N)    block-diagonal output weight
    o_ref     : (tm, N)     lane-dense output tile
    """
    h = jnp.dot(xp_ref[...], wband_ref[...], preferred_element_type=jnp.float32)
    h = h + bias_ref[...]                      # broadcast (1, W*H) over rows
    h = _softplus(h)                           # lane-dense transcendental work
    o_ref[...] = jnp.dot(h, wdiag_ref[...],
                         preferred_element_type=jnp.float32).astype(o_ref.dtype)


def elm_forward_pallas(Xp, w_band, bias_flat, w_diag, *, n_out,
                       row_tile=1024, vmem_limit_bytes=48 * 1024 * 1024):
    """Fused ELM forward over circularly padded rows.

    Xp        : (M, Np)     circularly padded rows (Np = N + 2*extent), float32
    w_band    : (Np, W*H)   block-banded first-layer weight
    bias_flat : (1, W*H)    per-window bias row
    w_diag    : (W*H, N)    block-diagonal output weight
    returns   : (M, N)
    """
    M, Np = Xp.shape
    WH = w_band.shape[1]
    N = n_out

    lane = lambda d: _round_up(d, 128)
    sub = lambda d: _round_up(d, 8)

    def _vmem_bytes(t):
        # Double-buffered row blocks + (constant-index but still double-
        # buffered) weights + in-kernel h temporaries.
        blocks = 2 * 4 * (t * lane(Np) + t * lane(N))
        weights = 2 * 4 * (sub(Np) * lane(WH) + sub(WH) * lane(N) + 8 * lane(WH))
        interm = 2 * 4 * t * lane(WH)
        return blocks + weights + interm

    budget = (3 * vmem_limit_bytes) // 4
    tm = max(8, min(_round_up(row_tile, 8), _round_up(M, 8)))
    while tm > 8 and _vmem_bytes(tm) > budget:
        tm = max(8, _round_up(tm // 2, 8))

    Mp = _round_up(M, tm)
    if Mp != M:
        Xp = jnp.pad(Xp, ((0, Mp - M), (0, 0)))

    out = pl.pallas_call(
        _elm_kernel,
        out_shape=jax.ShapeDtypeStruct((Mp, N), jnp.float32),
        grid=(Mp // tm,),
        in_specs=[
            pl.BlockSpec((tm, Np), lambda i: (i, 0)),    # padded rows
            pl.BlockSpec((Np, WH), lambda i: (0, 0)),    # banded W1
            pl.BlockSpec((1, WH), lambda i: (0, 0)),     # bias row
            pl.BlockSpec((WH, N), lambda i: (0, 0)),     # block-diag Wout
        ],
        out_specs=pl.BlockSpec((tm, N), lambda i: (i, 0)),   # lane-dense
        compiler_params=pltpu.CompilerParams(
            dimension_semantics=("parallel",),
            vmem_limit_bytes=vmem_limit_bytes),
    )(Xp, w_band, bias_flat, w_diag)
    return out[:M]


class ELM1DPallas:
    """JAX/Pallas port of the PyTorch ELM1D module (forward pass)."""

    def __init__(self, extent, step, hidden, positions=0, *, key, row_tile=1024):
        self.extent = extent
        self.step = step
        self.hidden = hidden
        self.positions = positions
        self.ks = step + 2 * extent
        self.in_features = self.ks + self.positions
        self.row_tile = row_tile

        k1, k2, k3 = jax.random.split(key, 3)
        # Deterministic init mimicking torch.nn.Linear uniform(-1/sqrt(fan_in), ...)
        b1 = 1.0 / math.sqrt(self.in_features)
        self.w_lin = jax.random.uniform(k1, (hidden, self.in_features),
                                        jnp.float32, -b1, b1)
        self.b_lin = jax.random.uniform(k2, (hidden,), jnp.float32, -b1, b1)
        b2 = 1.0 / math.sqrt(hidden)
        self.w_out = jax.random.uniform(k3, (self.step, hidden),
                                        jnp.float32, -b2, b2)

    def positional_encoding(self, N):
        W = N // self.step
        lin = jnp.linspace(0.0, 1.0, W) + self.step / N / 2
        pos = jnp.stack(
            [jnp.cos((2.0 ** k) * jnp.pi * lin) for k in range(self.positions)],
            axis=1)
        return pos.astype(jnp.float32)   # (W, positions)

    def _build_weights(self, N):
        """Banded first-layer weight, block-diagonal output weight, bias row."""
        W = N // self.step
        H = self.hidden
        ks = self.ks
        Np = N + 2 * self.extent

        # Block-banded W1:   wband[p, w*H + h] = Wlin[h, p - w*step] for
        # p in [w*step, w*step + ks), else 0.
        rows = jnp.arange(W)[:, None] * self.step + jnp.arange(ks)[None, :]   # (W, ks)
        oneh = jax.nn.one_hot(rows, Np, dtype=jnp.float32)                    # (W, ks, Np)
        w_lin_ks_t = self.w_lin[:, :ks].T                                     # (ks, H)
        w_band = jnp.einsum('wkp,kh->pwh', oneh, w_lin_ks_t).reshape(Np, W * H)

        # Block-diagonal Wout: wdiag[w*H + h, w*step + s] = Wout[s, h].
        eye = jnp.eye(W, dtype=jnp.float32)
        w_out_t = self.w_out.T                                                # (H, step)
        w_diag = (eye[:, None, :, None] * w_out_t[None, :, None, :]).reshape(
            W * H, W * self.step)

        # Fold positional encoding into a per-window bias:
        #   [window, pos] @ Wlin^T + b == window @ Wlin[:, :ks]^T
        #                                 + (b + pos @ Wlin[:, ks:]^T)
        if self.positions > 0:
            pos = self.positional_encoding(N)                   # (W, P)
            pos_bias = pos @ self.w_lin[:, ks:].T               # (W, H)
        else:
            pos_bias = jnp.zeros((W, H), jnp.float32)
        bias_flat = (self.b_lin[None, :] + pos_bias).reshape(1, W * H)

        return w_band, bias_flat, w_diag

    def __call__(self, X):
        M, N = X.shape
        assert N % self.step == 0
        X = X.astype(jnp.float32)

        # Circular pad (torch F.pad mode='circular').
        if self.extent > 0:
            Xp = jnp.concatenate(
                [X[:, -self.extent:], X, X[:, :self.extent]], axis=1)
        else:
            Xp = X

        w_band, bias_flat, w_diag = self._build_weights(N)
        return elm_forward_pallas(Xp, w_band, bias_flat, w_diag,
                                  n_out=N, row_tile=self.row_tile)

    # Pure-JAX reference using the original (unfold + concat) formulation,
    # in the same float32 math, for correctness checking.
    def reference(self, X):
        M, N = X.shape
        W = N // self.step
        X = X.astype(jnp.float32)
        Xp = jnp.pad(X, ((0, 0), (self.extent, self.extent)), mode="wrap")
        starts = jnp.arange(W) * self.step
        idx = starts[:, None] + jnp.arange(self.ks)[None, :]
        Xw = Xp[:, idx]                                         # (M, W, ks)
        if self.positions > 0:
            pos = self.positional_encoding(N)
            pos = jnp.broadcast_to(pos[None], (M, W, self.positions))
            Xw = jnp.concatenate([Xw, pos], axis=2)
        h = Xw @ self.w_lin.T + self.b_lin
        h = _softplus(h)
        y = h @ self.w_out.T
        return y.reshape(M, N)


if __name__ == "__main__":
    key = jax.random.PRNGKey(0)
    k_param, k_data = jax.random.split(key)

    # Small shapes consistent with the module: M=2 sequences of length N=16,
    # extent=2, step=4 -> W=4 windows of ks=8 per sequence, hidden=32,
    # positions=2 (so W*H = 128, lane-dense hidden block).
    extent, step, hidden, positions = 2, 4, 32, 2
    M, N = 2, 16

    model = ELM1DPallas(extent, step, hidden, positions, key=k_param)
    X = jax.random.normal(k_data, (M, N), dtype=jnp.float32)

    out = jax.block_until_ready(model(X))

    ref = model.reference(X)
    np.testing.assert_allclose(np.asarray(out), np.asarray(ref),
                               rtol=1e-5, atol=1e-5)
    assert out.shape == (M, N)
    print("KERNEL_OK")
</pallas_src>

<mosaic_0001>
module attributes {stable_mosaic.version = 11 : i64} {
  func.func @_elm_kernel(%arg0: i32, %arg1: memref<8x20xf32, #tpu.memory_space<vmem>>, %arg2: memref<20x128xf32, #tpu.memory_space<vmem>>, %arg3: memref<1x128xf32, #tpu.memory_space<vmem>>, %arg4: memref<128x16xf32, #tpu.memory_space<vmem>>, %arg5: memref<8x16xf32, #tpu.memory_space<vmem>>) attributes {dimension_semantics = [#tpu.dimension_semantics<parallel>], iteration_bounds = array<i64: 1>, scalar_prefetch = 0 : i64, scratch_operands = 0 : i64, tpu.core_type = #tpu.core_type<tc>, window_params = [{transform_indices = @transform_0, window_bounds = array<i64: 8, 20>}, {pipeline_mode = #tpu.pipeline_mode<synchronous>, transform_indices = @transform_1, window_bounds = array<i64: 20, 128>}, {pipeline_mode = #tpu.pipeline_mode<synchronous>, transform_indices = @transform_2, window_bounds = array<i64: 1, 128>}, {pipeline_mode = #tpu.pipeline_mode<synchronous>, transform_indices = @transform_3, window_bounds = array<i64: 128, 16>}, {transform_indices = @transform_4, window_bounds = array<i64: 8, 16>}]} {
    %c0 = arith.constant 0 : index
    %c0_0 = arith.constant 0 : index
    %0 = vector.load %arg1[%c0, %c0_0] : memref<8x20xf32, #tpu.memory_space<vmem>>, vector<8x20xf32>
    %c0_1 = arith.constant 0 : index
    %c0_2 = arith.constant 0 : index
    %1 = vector.load %arg2[%c0_1, %c0_2] : memref<20x128xf32, #tpu.memory_space<vmem>>, vector<20x128xf32>
    %cst = arith.constant dense<0.000000e+00> : vector<8x128xf32>
    %2 = tpu.matmul %0, %1, %cst {dimension_numbers = #tpu.dot_dimension_numbers<[1], [0], [0], [1], [0, 0, 1, 1], [], []>} : vector<8x20xf32>, vector<20x128xf32>, vector<8x128xf32> -> vector<8x128xf32>
    %c0_3 = arith.constant 0 : index
    %c0_4 = arith.constant 0 : index
    %3 = vector.load %arg3[%c0_3, %c0_4] : memref<1x128xf32, #tpu.memory_space<vmem>>, vector<1x128xf32>
    %4 = vector.broadcast %3 : vector<1x128xf32> to vector<8x128xf32>
    %5 = arith.addf %2, %4 : vector<8x128xf32>
    %cst_5 = arith.constant 2.000000e+01 : f32
    %6 = vector.broadcast %cst_5 : f32 to vector<8x128xf32>
    %7 = arith.cmpf ogt, %5, %6 : vector<8x128xf32>
    %cst_6 = arith.constant 2.000000e+01 : f32
    %8 = vector.broadcast %cst_6 : f32 to vector<8x128xf32>
    %9 = arith.minimumf %5, %8 : vector<8x128xf32>
    %10 = math.exp %9 : vector<8x128xf32>
    %11 = math.log1p %10 : vector<8x128xf32>
    %12 = arith.select %7, %5, %11 : vector<8x128xi1>, vector<8x128xf32>
    %c0_7 = arith.constant 0 : index
    %c0_8 = arith.constant 0 : index
    %13 = vector.load %arg4[%c0_7, %c0_8] : memref<128x16xf32, #tpu.memory_space<vmem>>, vector<128x16xf32>
    %cst_9 = arith.constant dense<0.000000e+00> : vector<8x16xf32>
    %14 = tpu.matmul %12, %13, %cst_9 {dimension_numbers = #tpu.dot_dimension_numbers<[1], [0], [0], [1], [0, 0, 1, 1], [], []>} : vector<8x128xf32>, vector<128x16xf32>, vector<8x16xf32> -> vector<8x16xf32>
    %c0_10 = arith.constant 0 : index
    %c0_11 = arith.constant 0 : index
    %15 = vector.load %arg5[%c0_10, %c0_11] : memref<8x16xf32, #tpu.memory_space<vmem>>, vector<8x16xf32>
    tpu.vector_store %arg5[%c0_10, %c0_11], %14 {strides = array<i32>} : memref<8x16xf32, #tpu.memory_space<vmem>>, vector<8x16xf32>,
    return
  }
  func.func @transform_0(%arg0: i32) -> (i32, i32) {
    %c0_i32 = arith.constant 0 : i32
    %c0_i32_0 = arith.constant 0 : i32
    return %arg0, %c0_i32 : i32, i32
  }
  func.func @transform_1(%arg0: i32) -> (i32, i32) {
    %c0_i32 = arith.constant 0 : i32
    %c0_i32_0 = arith.constant 0 : i32
    %c0_i32_1 = arith.constant 0 : i32
    return %c0_i32, %c0_i32_0 : i32, i32
  }
  func.func @transform_2(%arg0: i32) -> (i32, i32) {
    %c0_i32 = arith.constant 0 : i32
    %c0_i32_0 = arith.constant 0 : i32
    %c0_i32_1 = arith.constant 0 : i32
    return %c0_i32, %c0_i32_0 : i32, i32
  }
  func.func @transform_3(%arg0: i32) -> (i32, i32) {
    %c0_i32 = arith.constant 0 : i32
    %c0_i32_0 = arith.constant 0 : i32
    %c0_i32_1 = arith.constant 0 : i32
    return %c0_i32, %c0_i32_0 : i32, i32
  }
  func.func @transform_4(%arg0: i32) -> (i32, i32) {
    %c0_i32 = arith.constant 0 : i32
    %c0_i32_0 = arith.constant 0 : i32
    return %arg0, %c0_i32 : i32, i32
  }
}

</mosaic_0001>

<llo_original>
// kernel: tpu_custom_call.1
$region0: #{tpu_custom_call.1}
  #allocation0 [shape = 'u32[]', space=smem, size = 0x4, offset = 0x4, fixed_abs, tag = 'smem constant byte address 0x4 - core index']
  #allocation1 [shape = 'u32[144,128]{1,0:T(1,128)}', space=vmem, size = 0x12000, scoped, tag = 'internal scratch']
  %s0 = inlined_call_operand.vmem [shape: f32[8,20], index: 0, kind: input, shape index: {}]
  %s1 = inlined_call_operand.vmem [shape: f32[20,128], index: 1, kind: input, shape index: {}]
  %s2 = inlined_call_operand.vmem [shape: f32[1,128], index: 2, kind: input, shape index: {}]
  %s3 = inlined_call_operand.vmem [shape: f32[128,16], index: 3, kind: input, shape index: {}]
  %s4 = inlined_call_operand.hbm [shape: f32[8,16], index: 4, kind: output, shape index: {}]
  %s5 = sld [smem:[#allocation0]]
  $region26: #{tpu_custom_call.1} parent=0
    _
  %s7 = ssub.s32 1, %s5
  %s8 = scalar_select 0, %s7, %s5
  $region1: #{tpu_custom_call.1} parent=0
    #allocation2 [shape = 'u8[4096]{0}', space=vmem, size = 0x1000, scoped, tag = 'output window, operand 0, single buffered']
    #allocation3 [shape = 's32[1]{0}', space=sflag, size = 0x4, scoped, tag = 'scoped memory for tpu_custom_call.1']
    %9 = vsyncpa [#allocation3], 0
    // Predicated region
    $region2: #{tpu_custom_call.1} parent=1 // pred_check
      _
    $region3: #{tpu_custom_call.1} parent=1 // pred_check_branch
      %11 = sbr.rel (0) target = $region5
    $region4: #{tpu_custom_call.1} parent=1 // pred_region
      _
    $region5: #{tpu_custom_call.1} parent=1 // pred_fallthru
      _
    // Predicated region
    $region6: #{tpu_custom_call.1} parent=1 // pred_check
      _
    $region7: #{tpu_custom_call.1} parent=1 // pred_check_branch
      %13 = sbr.rel (0) target = $region9
    $region8: #{tpu_custom_call.1} parent=1 // pred_region
      _
    $region9: #{tpu_custom_call.1} parent=1 // pred_fallthru
      _
    // Predicated region
    $region10: #{tpu_custom_call.1} parent=1 // pred_check
      _
    $region11: #{tpu_custom_call.1} parent=1 // pred_check_branch
      %15 = sbr.rel (0) target = $region13
    $region12: #{tpu_custom_call.1} parent=1 // pred_region
      _
    $region13: #{tpu_custom_call.1} parent=1 // pred_fallthru
      _
    // Predicated region
    $region14: #{tpu_custom_call.1} parent=1 // pred_check
      _
    $region15: #{tpu_custom_call.1} parent=1 // pred_check_branch
      %17 = sbr.rel (0) target = $region17
    $region16: #{tpu_custom_call.1} parent=1 // pred_region
      _
    $region17: #{tpu_custom_call.1} parent=1 // pred_fallthru
      _
    %v18 = vld [vmem:[%s0] sm:$0xff]
    %v19 = vld [vmem:[%s1] sm:$0xff]
    %v20 = vld [vmem:[%s1 + $0x8] sm:$0xff]
    %v21 = vld [vmem:[%s1 + $0x10] sm:$0xf]
    %v22 = vld [vmem:[%s2] sm:$0x1]
    %v24 = vlaneseq
    %v25 = vshrl.u32 %v24, 7
    %v26 = vsub.s32 0, %v25
    %v27 = vrot.slane %v22, %v26
    %vm29 = vcmask 162816
    %v31 = vsel %vm29, %v18, 0
    %vm33 = vcmask 1043456
    %v35 = vsel %vm33, %v21, 0
    %37 = vmatprep.subr.mxu0 0.0
    %38 = vmatpush1.msra.mxu0 %v19
    %39 = vmatprep.subr.mxu0 0.0
    %40 = vmatpush1.msra.mxu0 %v20
    %41 = vmatprep.subr.mxu0 0.0
    %42 = vmatpush1.msra.mxu0 %v35
    %43 = vmatprep.subr.mxu0 0.0
    %44 = vmatpush1.msra.mxu0 0.0
    %45 = vmatprep.subr.mxu0 0.0
    %46 = vmatpush1.msra.mxu0 0.0
    %47 = vmatprep.subr.mxu0 0.0
    %48 = vmatpush1.msra.mxu0 0.0
    %49 = vmatprep.subr.mxu0 0.0
    %50 = vmatpush1.msra.mxu0 0.0
    %51 = vmatprep.subr.mxu0 0.0
    %52 = vmatpush1.msra.mxu0 0.0
    %53 = vmatprep.subr.mxu0 0.0
    %54 = vmatpush1.msra.mxu0 0.0
    %55 = vmatprep.subr.mxu0 0.0
    %56 = vmatpush1.msra.mxu0 0.0
    %57 = vmatprep.subr.mxu0 0.0
    %58 = vmatpush1.msra.mxu0 0.0
    %59 = vmatprep.subr.mxu0 0.0
    %60 = vmatpush1.msra.mxu0 0.0
    %61 = vmatprep.subr.mxu0 0.0
    %62 = vmatpush1.msra.mxu0 0.0
    %63 = vmatprep.subr.mxu0 0.0
    %64 = vmatpush1.msra.mxu0 0.0
    %65 = vmatprep.subr.mxu0 0.0
    %66 = vmatpush1.msra.mxu0 0.0
    %67 = vmatprep.subr.mxu0 0.0
    %68 = vmatpush1.msra.mxu0 0.0
    %69 = vmatprep.subr.mxu0 0.0
    %70 = vmatpush1.msra.mxu0 0.0
    %71 = vmatprep.subr.mxu0 0.0
    %72 = vmatpush1.msra.mxu0 0.0
    %73 = vmatprep.subr.mxu0 0.0
    %74 = vmatpush1.msra.mxu0 0.0
    %75 = vmatprep.subr.mxu0 0.0
    %76 = vmatpush1.msra.mxu0 0.0
    %77 = vmatprep.subr.mxu0 0.0
    %78 = vmatpush1.msra.mxu0 0.0
    %79 = vmatprep.subr.mxu0 0.0
    %80 = vmatpush1.msra.mxu0 0.0
    %81 = vmatprep.subr.mxu0 0.0
    %82 = vmatpush1.msra.mxu0 0.0
    %83 = vmatprep.subr.mxu0 0.0
    %84 = vmatpush1.msra.mxu0 0.0
    %85 = vmatprep.subr.mxu0 0.0
    %86 = vmatpush1.msra.mxu0 0.0
    %87 = vmatprep.subr.mxu0 0.0
    %88 = vmatpush1.msra.mxu0 0.0
    %89 = vmatprep.subr.mxu0 0.0
    %90 = vmatpush1.msra.mxu0 0.0
    %91 = vmatprep.subr.mxu0 0.0
    %92 = vmatpush1.msra.mxu0 0.0
    %93 = vmatprep.subr.mxu0 0.0
    %94 = vmatpush1.msra.mxu0 0.0
    %95 = vmatprep.subr.mxu0 0.0
    %96 = vmatpush1.msra.mxu0 0.0
    %97 = vmatprep.subr.mxu0 0.0
    %98 = vmatpush1.msra.mxu0 0.0
    %99 = vmatprep.subr.mxu0 0.0
    %100 = vmatpush1.msra.mxu0 0.0
    %101 = vmatprep.mubr.f32.mxu0 0.0
    %102 = vmatmul.mubr.f32.gmra.mrb[0].mxu0 %v31
    %v103 = vpop.f32.mrb[0].mxu0
    %v104 = vadd.f32 %v27, %v103
    %v105 = vpop.f32.mrb[0].mxu0
    %106 = vdwg.mxu0
    %vm107 = vcmp.gt.f32.partialorder %v104, 20.0
    %v108 = vmin.f32 %v104, 20.0
    %v109 = vmul.f32 %v108, 1.442695
    %v110 = vpow.pop %v109
    %v111 = vadd.f32 %v110, 1.0
    %v112 = vlog2.pop %v111
    %v113 = vmul.f32 %v112, 0.6931472
    %v114 = vmul.f32 -0.5, %v110
    %v115 = vadd.f32 %v114, 1.0
    %v116 = vmul.f32 %v115, %v110
    %v117 = vand.u32 2147483647, %v110
    %vm118 = vcmp.lt.f32.partialorder %v117, 0.0004427343
    %v119 = vsel %vm118, %v116, %v113
    %v120 = vsel %vm107, %v104, %v119
    %v121 = vld [vmem:[%s3] sm:$0xff]
    %v122 = vld [vmem:[%s3 + $0x8] sm:$0xff]
    %v123 = vld [vmem:[%s3 + $0x10] sm:$0xff]
    %v124 = vld [vmem:[%s3 + $0x18] sm:$0xff]
    %v125 = vld [vmem:[%s3 + $0x20] sm:$0xff]
    %v126 = vld [vmem:[%s3 + $0x28] sm:$0xff]
    %v127 = vld [vmem:[%s3 + $0x30] sm:$0xff]
    %v128 = vld [vmem:[%s3 + $0x38] sm:$0xff]
    %v129 = vld [vmem:[%s3 + $0x40] sm:$0xff]
    %v130 = vld [vmem:[%s3 + $0x48] sm:$0xff]
    %v131 = vld [vmem:[%s3 + $0x50] sm:$0xff]
    %v132 = vld [vmem:[%s3 + $0x58] sm:$0xff]
    %v133 = vld [vmem:[%s3 + $0x60] sm:$0xff]
    %v134 = vld [vmem:[%s3 + $0x68] sm:$0xff]
    %v135 = vld [vmem:[%s3 + $0x70] sm:$0xff]
    %v136 = vld [vmem:[%s3 + $0x78] sm:$0xff]
    %137 = vmatprep.subr.mxu0 0.0
    %138 = vmatpush1.msra.mxu0 %v121
    %139 = vmatprep.subr.mxu0 0.0
    %140 = vmatpush1.msra.mxu0 %v122
    %141 = vmatprep.subr.mxu0 0.0
    %142 = vmatpush1.msra.mxu0 %v123
    %143 = vmatprep.subr.mxu0 0.0
    %144 = vmatpush1.msra.mxu0 %v124
    %145 = vmatprep.subr.mxu0 0.0
    %146 = vmatpush1.msra.mxu0 %v125
    %147 = vmatprep.subr.mxu0 0.0
    %148 = vmatpush1.msra.mxu0 %v126
    %149 = vmatprep.subr.mxu0 0.0
    %150 = vmatpush1.msra.mxu0 %v127
    %151 = vmatprep.subr.mxu0 0.0
    %152 = vmatpush1.msra.mxu0 %v128
    %153 = vmatprep.subr.mxu0 0.0
    %154 = vmatpush1.msra.mxu0 %v129
    %155 = vmatprep.subr.mxu0 0.0
    %156 = vmatpush1.msra.mxu0 %v130
    %157 = vmatprep.subr.mxu0 0.0
    %158 = vmatpush1.msra.mxu0 %v131
    %159 = vmatprep.subr.mxu0 0.0
    %160 = vmatpush1.msra.mxu0 %v132
    %161 = vmatprep.subr.mxu0 0.0
    %162 = vmatpush1.msra.mxu0 %v133
    %163 = vmatprep.subr.mxu0 0.0
    %164 = vmatpush1.msra.mxu0 %v134
    %165 = vmatprep.subr.mxu0 0.0
    %166 = vmatpush1.msra.mxu0 %v135
    %167 = vmatprep.subr.mxu0 0.0
    %168 = vmatpush1.msra.mxu0 %v136
    %169 = vmatprep.subr.mxu0 0.0
    %170 = vmatpush1.msra.mxu0 0.0
    %171 = vmatprep.subr.mxu0 0.0
    %172 = vmatpush1.msra.mxu0 0.0
    %173 = vmatprep.subr.mxu0 0.0
    %174 = vmatpush1.msra.mxu0 0.0
    %175 = vmatprep.subr.mxu0 0.0
    %176 = vmatpush1.msra.mxu0 0.0
    %177 = vmatprep.subr.mxu0 0.0
    %178 = vmatpush1.msra.mxu0 0.0
    %179 = vmatprep.subr.mxu0 0.0
    %180 = vmatpush1.msra.mxu0 0.0
    %181 = vmatprep.subr.mxu0 0.0
    %182 = vmatpush1.msra.mxu0 0.0
    %183 = vmatprep.subr.mxu0 0.0
    %184 = vmatpush1.msra.mxu0 0.0
    %185 = vmatprep.subr.mxu0 0.0
    %186 = vmatpush1.msra.mxu0 0.0
    %187 = vmatprep.subr.mxu0 0.0
    %188 = vmatpush1.msra.mxu0 0.0
    %189 = vmatprep.subr.mxu0 0.0
    %190 = vmatpush1.msra.mxu0 0.0
    %191 = vmatprep.subr.mxu0 0.0
    %192 = vmatpush1.msra.mxu0 0.0
    %193 = vmatprep.subr.mxu0 0.0
    %194 = vmatpush1.msra.mxu0 0.0
    %195 = vmatprep.subr.mxu0 0.0
    %196 = vmatpush1.msra.mxu0 0.0
    %197 = vmatprep.subr.mxu0 0.0
    %198 = vmatpush1.msra.mxu0 0.0
    %199 = vmatprep.subr.mxu0 0.0
    %200 = vmatpush1.msra.mxu0 0.0
    %201 = vmatprep.mubr.f32.mxu0 0.0
    %202 = vmatmul.mubr.f32.gmra.mrb[0].mxu0 %v120
    %v203 = vpop.f32.mrb[0].mxu0
    %v204 = vadd.f32 0.0, %v203
    %v205 = vpop.f32.mrb[0].mxu0
    %206 = vdwg.mxu0
    %vm207 = vcmask 130048
    %208 = vst.msk [vmem:[#allocation2] sm:$0xff] %vm207, %v204
    // Predicated region
    $region18: #{tpu_custom_call.1} parent=1 // pred_check
      _
    $region19: #{tpu_custom_call.1} parent=1 // pred_check_branch
      %210 = sbr.rel (0) target = $region21
    $region20: #{tpu_custom_call.1} parent=1 // pred_region
      %s212 = ssub.s32 128, 128
      %213 = vsyncadd [#allocation3], %s212
      %s215 = sshll.u32 [#allocation2], 4
      %s216 = int_to_ptr.vmem [resolvable:$true] %s215
      %218 = dma.vmem_to_hbm [thread:$0]  %s216, 128, %s4, [#allocation3]
    $region21: #{tpu_custom_call.1} parent=1 // pred_fallthru
      _
    // Predicated region
    $region22: #{tpu_custom_call.1} parent=1 // pred_check
      _
    $region23: #{tpu_custom_call.1} parent=1 // pred_check_branch
      %220 = sbr.rel (0) target = $region25
    $region24: #{tpu_custom_call.1} parent=1 // pred_region
      %221 = dma.done [#allocation3], 128
    $region25: #{tpu_custom_call.1} parent=1 // pred_fallthru
      _
    %222 = vsyncpa [#allocation3], 1

</llo_original>
